<compile_context>
chip_gen: v7x
topology: tpu7x:2x2x1
jax: 0.10.0
libtpu: 0.0.40
codegen_flags: <defaults>
</compile_context>

<pallas_src>
import functools

import jax
import jax.numpy as jnp
from jax.experimental import pallas as pl
from jax.experimental.pallas import tpu as pltpu


def _round_up(n, m):
    return ((n + m - 1) // m) * m


def _sigmoid(v):
    # EUP tanh (transcendental slot, otherwise idle) + cheap VPU mul/add;
    # avoids an explicit f32 divide in the VALU slots.
    return 0.5 * jnp.tanh(0.5 * v) + 0.5


def _hidden_layer(x_ref, w1_ref, b1_ref):
    """h = sigmoid(W1 @ x + b1) as `input_size` broadcast-FMAs on the VPU.

    x_ref: (I, TB) batch-in-lanes tile; returns (H, TB).
    """
    x = x_ref[...]
    w1 = w1_ref[...]
    pre = b1_ref[...]                                   # (H, 1): bias folded into accumulator init
    for i in range(x.shape[0]):                         # static unroll, I = 3
        pre = pre + w1[:, i:i + 1] * x[i:i + 1, :]      # (H,1)*(1,TB) -> (H,TB)
    return _sigmoid(pre)


def _mlp_p0_kernel(x_ref, w1_ref, b1_ref, w2d_ref, b2d_ref, o_ref):
    """output_size == 2 fast path.

    softmax of two logits == sigmoid(z0 - z1); the wrapper pre-computes the
    difference weights so the kernel evaluates a single difference logit and
    stores only the lane-dense p0 row.
      x_ref  : (I, TB)   w1_ref : (H, I)   b1_ref: (H, 1)
      w2d_ref: (1, H)    b2d_ref: (1, 1)   o_ref : (1, TB)
    """
    h = _hidden_layer(x_ref, w1_ref, b1_ref)            # (H, TB)
    w2d = w2d_ref[...]
    zd = b2d_ref[...]                                    # (1, 1)
    for j in range(h.shape[0]):                          # static unroll, H = 10
        zd = zd + w2d[:, j:j + 1] * h[j:j + 1, :]        # (1,1)*(1,TB) -> (1,TB)
    o_ref[...] = _sigmoid(zd).astype(o_ref.dtype)


def _mlp_softmax_kernel(x_ref, w1_ref, b1_ref, w2_ref, b2_ref, o_ref):
    """General path (output_size != 2): full softmax over the feature axis (axis 0)."""
    h = _hidden_layer(x_ref, w1_ref, b1_ref)             # (H, TB)
    w2 = w2_ref[...]
    z = b2_ref[...]                                       # (O, 1)
    for j in range(h.shape[0]):
        z = z + w2[:, j:j + 1] * h[j:j + 1, :]            # (O,1)*(1,TB) -> (O,TB)
    zc = z - jnp.max(z, axis=0, keepdims=True)
    e = jnp.exp(zc)
    # exact division (not approx reciprocal) so sum-to-1 holds at f32 accuracy
    o_ref[...] = (e / jnp.sum(e, axis=0, keepdims=True)).astype(o_ref.dtype)


def _choose_tile(batch, tile_b):
    """Lane tile for the 1-D batch grid.

    - batch <= 256: one full-extent block (always a legal BlockSpec, no padding).
    - otherwise: multiple of 128, capped at tile_b, chosen so large batches get
      >= 4 grid steps (lets "parallel" shard tiles across both TCs on v7x).
      The last block may be ragged; Pallas masks the out-of-bounds lanes and
      nothing in the kernel reduces across lanes.
    """
    if batch <= 256:
        return batch
    t = min(tile_b, _round_up(pl.cdiv(batch, 4), 128))
    return max(128, t)


def _pallas_forward_feature_major(x_t, w1, b1c, w2_rows, b2_rows, kernel, tile_b):
    """Core pallas_call on feature-major x_t (in_size, B); returns (rows, B).

    Zero wrapper-side copies: callers that already hold feature-major x can use
    this directly and avoid the batch-major wrapper's single transpose.
    """
    in_size, batch = x_t.shape
    hidden = w1.shape[0]
    out_rows = w2_rows.shape[0]

    tile = _choose_tile(batch, tile_b)
    grid = (pl.cdiv(batch, tile),)

    return pl.pallas_call(
        kernel,
        out_shape=jax.ShapeDtypeStruct((out_rows, batch), jnp.float32),
        grid_spec=pltpu.PrefetchScalarGridSpec(
            num_scalar_prefetch=0,
            grid=grid,
            in_specs=[
                pl.BlockSpec((in_size, tile), lambda i: (0, i)),      # x tile (lane-dense)
                pl.BlockSpec((hidden, in_size), lambda i: (0, 0)),    # W1 (VMEM resident)
                pl.BlockSpec((hidden, 1), lambda i: (0, 0)),          # b1
                pl.BlockSpec((out_rows, hidden), lambda i: (0, 0)),   # W2 (or w2[0]-w2[1])
                pl.BlockSpec((out_rows, 1), lambda i: (0, 0)),        # b2 (or b2[0]-b2[1])
            ],
            out_specs=pl.BlockSpec((out_rows, tile), lambda i: (0, i)),
        ),
        compiler_params=pltpu.CompilerParams(
            dimension_semantics=("parallel",),   # shard batch tiles over both TCs on v7x
            vmem_limit_bytes=32 * 1024 * 1024,
        ),
    )(x_t, w1, b1c, w2_rows, b2_rows)


@functools.partial(jax.jit, static_argnames=("tile_b",))
def asset_allocation_forward(x, w1, b1, w2, b2, *, tile_b=32768):
    """Forward pass of AssetAllocationNetwork (PyTorch nn.Linear weight layout).

    x : (B, input_size) f32   (batch-major, as in the nn.Module)
    w1: (hidden, input_size)   b1: (hidden,)
    w2: (output, hidden)       b2: (output,)
    returns (B, output) f32 = softmax(sigmoid(x W1^T + b1) W2^T + b2, axis=1)
    """
    batch, _ = x.shape
    hidden = w1.shape[0]
    out_size = w2.shape[0]

    # Feature-major (batch-in-lanes) view of x: the only wrapper-side copy.
    x_t = x.T
    b1c = b1.reshape(hidden, 1)

    if out_size == 2:
        # softmax over 2 logits == sigmoid of the difference logit; fold the row
        # difference into the weights so the kernel emits only p0 (1, B).
        w2d = (w2[0] - w2[1]).reshape(1, hidden)
        b2d = (b2[0] - b2[1]).reshape(1, 1)
        p0 = _pallas_forward_feature_major(
            x_t, w1, b1c, w2d, b2d, _mlp_p0_kernel, tile_b)[0]        # (B,)
        return jnp.stack([p0, 1.0 - p0], axis=1)                      # (B, 2)

    b2c = b2.reshape(out_size, 1)
    out_t = _pallas_forward_feature_major(
        x_t, w1, b1c, w2, b2c, _mlp_softmax_kernel, tile_b)           # (O, B)
    return out_t.T


def init_params(key, input_size=3, hidden_size=10, output_size=2):
    """nn.Linear-style init, U(-1/sqrt(fan_in), 1/sqrt(fan_in)), PyTorch layout."""
    k1, k2, k3, k4 = jax.random.split(key, 4)
    bound1 = 1.0 / (input_size ** 0.5)
    bound2 = 1.0 / (hidden_size ** 0.5)
    w1 = jax.random.uniform(k1, (hidden_size, input_size), jnp.float32, -bound1, bound1)
    b1 = jax.random.uniform(k2, (hidden_size,), jnp.float32, -bound1, bound1)
    w2 = jax.random.uniform(k3, (output_size, hidden_size), jnp.float32, -bound2, bound2)
    b2 = jax.random.uniform(k4, (output_size,), jnp.float32, -bound2, bound2)
    return w1, b1, w2, b2


def reference_forward(x, w1, b1, w2, b2):
    h = jax.nn.sigmoid(x @ w1.T + b1)
    return jax.nn.softmax(h @ w2.T + b2, axis=1)


if __name__ == "__main__":
    key = jax.random.PRNGKey(0)
    kx, kp, kx2, kp3, kx3 = jax.random.split(key, 5)

    input_size, hidden_size, output_size = 3, 10, 2
    w1, b1, w2, b2 = init_params(kp, input_size, hidden_size, output_size)

    # Small shape consistent with the module (batch=2): single full-extent block.
    x = jax.random.normal(kx, (2, input_size), jnp.float32)
    out = jax.block_until_ready(asset_allocation_forward(x, w1, b1, w2, b2))
    ref = reference_forward(x, w1, b1, w2, b2)
    assert out.shape == (2, output_size)
    assert jnp.allclose(out, ref, atol=1e-5, rtol=1e-5), (out, ref)
    assert jnp.allclose(jnp.sum(out, axis=1), jnp.ones((2,)), atol=1e-5)

    # Larger batch (300): multi-step grid (tile=128, 3 steps) with a ragged last
    # block — exercises the un-padded cdiv grid and megacore sharding.
    x2 = jax.random.normal(kx2, (300, input_size), jnp.float32)
    out2 = jax.block_until_ready(asset_allocation_forward(x2, w1, b1, w2, b2))
    ref2 = reference_forward(x2, w1, b1, w2, b2)
    assert out2.shape == (300, output_size)
    assert jnp.allclose(out2, ref2, atol=1e-5, rtol=1e-5)
    assert jnp.allclose(jnp.sum(out2, axis=1), jnp.ones((300,)), atol=1e-5)

    # General exact-softmax fallback (output_size != 2).
    w1c, b1c3, w2c, b2c3 = init_params(kp3, input_size, hidden_size, 3)
    x3 = jax.random.normal(kx3, (5, input_size), jnp.float32)
    out3 = jax.block_until_ready(asset_allocation_forward(x3, w1c, b1c3, w2c, b2c3))
    ref3 = reference_forward(x3, w1c, b1c3, w2c, b2c3)
    assert out3.shape == (5, 3)
    assert jnp.allclose(out3, ref3, atol=1e-5, rtol=1e-5)
    assert jnp.allclose(jnp.sum(out3, axis=1), jnp.ones((5,)), atol=1e-5)

    print("KERNEL_OK")
</pallas_src>

<mosaic_0001>
module attributes {stable_mosaic.version = 11 : i64} {
  func.func @_mlp_p0_kernel(%arg0: i32, %arg1: memref<3x2xf32, #tpu.memory_space<vmem>>, %arg2: memref<10x3xf32, #tpu.memory_space<vmem>>, %arg3: memref<10x1xf32, #tpu.memory_space<vmem>>, %arg4: memref<1x10xf32, #tpu.memory_space<vmem>>, %arg5: memref<1x1xf32, #tpu.memory_space<vmem>>, %arg6: memref<1x2xf32, #tpu.memory_space<vmem>>) attributes {dimension_semantics = [#tpu.dimension_semantics<parallel>], iteration_bounds = array<i64: 1>, scalar_prefetch = 0 : i64, scratch_operands = 0 : i64, tpu.core_type = #tpu.core_type<tc>, window_params = [{transform_indices = @transform_0, window_bounds = array<i64: 3, 2>}, {pipeline_mode = #tpu.pipeline_mode<synchronous>, transform_indices = @transform_1, window_bounds = array<i64: 10, 3>}, {pipeline_mode = #tpu.pipeline_mode<synchronous>, transform_indices = @transform_2, window_bounds = array<i64: 10, 1>}, {pipeline_mode = #tpu.pipeline_mode<synchronous>, transform_indices = @transform_3, window_bounds = array<i64: 1, 10>}, {pipeline_mode = #tpu.pipeline_mode<synchronous>, transform_indices = @transform_4, window_bounds = array<i64: 1, 1>}, {transform_indices = @transform_5, window_bounds = array<i64: 1, 2>}]} {
    %c0 = arith.constant 0 : index
    %c0_0 = arith.constant 0 : index
    %0 = vector.load %arg1[%c0, %c0_0] : memref<3x2xf32, #tpu.memory_space<vmem>>, vector<3x2xf32>
    %c0_1 = arith.constant 0 : index
    %c0_2 = arith.constant 0 : index
    %1 = vector.load %arg2[%c0_1, %c0_2] : memref<10x3xf32, #tpu.memory_space<vmem>>, vector<10x3xf32>
    %c0_3 = arith.constant 0 : index
    %c0_4 = arith.constant 0 : index
    %2 = vector.load %arg3[%c0_3, %c0_4] : memref<10x1xf32, #tpu.memory_space<vmem>>, vector<10x1xf32>
    %3 = vector.extract_strided_slice %1 {offsets = [0, 0], sizes = [10, 1], strides = [1, 1]} : vector<10x3xf32> to vector<10x1xf32>
    %4 = vector.extract_strided_slice %0 {offsets = [0, 0], sizes = [1, 2], strides = [1, 1]} : vector<3x2xf32> to vector<1x2xf32>
    %5 = vector.broadcast %3 : vector<10x1xf32> to vector<10x2xf32>
    %6 = vector.broadcast %4 : vector<1x2xf32> to vector<10x2xf32>
    %7 = arith.mulf %5, %6 : vector<10x2xf32>
    %8 = vector.broadcast %2 : vector<10x1xf32> to vector<10x2xf32>
    %9 = arith.addf %8, %7 : vector<10x2xf32>
    %10 = vector.extract_strided_slice %1 {offsets = [0, 1], sizes = [10, 1], strides = [1, 1]} : vector<10x3xf32> to vector<10x1xf32>
    %11 = vector.extract_strided_slice %0 {offsets = [1, 0], sizes = [1, 2], strides = [1, 1]} : vector<3x2xf32> to vector<1x2xf32>
    %12 = vector.broadcast %10 : vector<10x1xf32> to vector<10x2xf32>
    %13 = vector.broadcast %11 : vector<1x2xf32> to vector<10x2xf32>
    %14 = arith.mulf %12, %13 : vector<10x2xf32>
    %15 = arith.addf %9, %14 : vector<10x2xf32>
    %16 = vector.extract_strided_slice %1 {offsets = [0, 2], sizes = [10, 1], strides = [1, 1]} : vector<10x3xf32> to vector<10x1xf32>
    %17 = vector.extract_strided_slice %0 {offsets = [2, 0], sizes = [1, 2], strides = [1, 1]} : vector<3x2xf32> to vector<1x2xf32>
    %18 = vector.broadcast %16 : vector<10x1xf32> to vector<10x2xf32>
    %19 = vector.broadcast %17 : vector<1x2xf32> to vector<10x2xf32>
    %20 = arith.mulf %18, %19 : vector<10x2xf32>
    %21 = arith.addf %15, %20 : vector<10x2xf32>
    %cst = arith.constant 5.000000e-01 : f32
    %22 = vector.broadcast %cst : f32 to vector<10x2xf32>
    %23 = arith.mulf %22, %21 : vector<10x2xf32>
    %24 = math.tanh %23 : vector<10x2xf32>
    %cst_5 = arith.constant 5.000000e-01 : f32
    %25 = vector.broadcast %cst_5 : f32 to vector<10x2xf32>
    %26 = arith.mulf %25, %24 : vector<10x2xf32>
    %cst_6 = arith.constant 5.000000e-01 : f32
    %27 = vector.broadcast %cst_6 : f32 to vector<10x2xf32>
    %28 = arith.addf %26, %27 : vector<10x2xf32>
    %c0_7 = arith.constant 0 : index
    %c0_8 = arith.constant 0 : index
    %29 = vector.load %arg4[%c0_7, %c0_8] : memref<1x10xf32, #tpu.memory_space<vmem>>, vector<1x10xf32>
    %c0_9 = arith.constant 0 : index
    %c0_10 = arith.constant 0 : index
    %30 = vector.load %arg5[%c0_9, %c0_10] : memref<1x1xf32, #tpu.memory_space<vmem>>, vector<1x1xf32>
    %31 = vector.extract_strided_slice %29 {offsets = [0, 0], sizes = [1, 1], strides = [1, 1]} : vector<1x10xf32> to vector<1x1xf32>
    %32 = vector.extract_strided_slice %28 {offsets = [0, 0], sizes = [1, 2], strides = [1, 1]} : vector<10x2xf32> to vector<1x2xf32>
    %33 = vector.broadcast %31 : vector<1x1xf32> to vector<1x2xf32>
    %34 = arith.mulf %33, %32 : vector<1x2xf32>
    %35 = vector.broadcast %30 : vector<1x1xf32> to vector<1x2xf32>
    %36 = arith.addf %35, %34 : vector<1x2xf32>
    %37 = vector.extract_strided_slice %29 {offsets = [0, 1], sizes = [1, 1], strides = [1, 1]} : vector<1x10xf32> to vector<1x1xf32>
    %38 = vector.extract_strided_slice %28 {offsets = [1, 0], sizes = [1, 2], strides = [1, 1]} : vector<10x2xf32> to vector<1x2xf32>
    %39 = vector.broadcast %37 : vector<1x1xf32> to vector<1x2xf32>
    %40 = arith.mulf %39, %38 : vector<1x2xf32>
    %41 = arith.addf %36, %40 : vector<1x2xf32>
    %42 = vector.extract_strided_slice %29 {offsets = [0, 2], sizes = [1, 1], strides = [1, 1]} : vector<1x10xf32> to vector<1x1xf32>
    %43 = vector.extract_strided_slice %28 {offsets = [2, 0], sizes = [1, 2], strides = [1, 1]} : vector<10x2xf32> to vector<1x2xf32>
    %44 = vector.broadcast %42 : vector<1x1xf32> to vector<1x2xf32>
    %45 = arith.mulf %44, %43 : vector<1x2xf32>
    %46 = arith.addf %41, %45 : vector<1x2xf32>
    %47 = vector.extract_strided_slice %29 {offsets = [0, 3], sizes = [1, 1], strides = [1, 1]} : vector<1x10xf32> to vector<1x1xf32>
    %48 = vector.extract_strided_slice %28 {offsets = [3, 0], sizes = [1, 2], strides = [1, 1]} : vector<10x2xf32> to vector<1x2xf32>
    %49 = vector.broadcast %47 : vector<1x1xf32> to vector<1x2xf32>
    %50 = arith.mulf %49, %48 : vector<1x2xf32>
    %51 = arith.addf %46, %50 : vector<1x2xf32>
    %52 = vector.extract_strided_slice %29 {offsets = [0, 4], sizes = [1, 1], strides = [1, 1]} : vector<1x10xf32> to vector<1x1xf32>
    %53 = vector.extract_strided_slice %28 {offsets = [4, 0], sizes = [1, 2], strides = [1, 1]} : vector<10x2xf32> to vector<1x2xf32>
    %54 = vector.broadcast %52 : vector<1x1xf32> to vector<1x2xf32>
    %55 = arith.mulf %54, %53 : vector<1x2xf32>
    %56 = arith.addf %51, %55 : vector<1x2xf32>
    %57 = vector.extract_strided_slice %29 {offsets = [0, 5], sizes = [1, 1], strides = [1, 1]} : vector<1x10xf32> to vector<1x1xf32>
    %58 = vector.extract_strided_slice %28 {offsets = [5, 0], sizes = [1, 2], strides = [1, 1]} : vector<10x2xf32> to vector<1x2xf32>
    %59 = vector.broadcast %57 : vector<1x1xf32> to vector<1x2xf32>
    %60 = arith.mulf %59, %58 : vector<1x2xf32>
    %61 = arith.addf %56, %60 : vector<1x2xf32>
    %62 = vector.extract_strided_slice %29 {offsets = [0, 6], sizes = [1, 1], strides = [1, 1]} : vector<1x10xf32> to vector<1x1xf32>
    %63 = vector.extract_strided_slice %28 {offsets = [6, 0], sizes = [1, 2], strides = [1, 1]} : vector<10x2xf32> to vector<1x2xf32>
    %64 = vector.broadcast %62 : vector<1x1xf32> to vector<1x2xf32>
    %65 = arith.mulf %64, %63 : vector<1x2xf32>
    %66 = arith.addf %61, %65 : vector<1x2xf32>
    %67 = vector.extract_strided_slice %29 {offsets = [0, 7], sizes = [1, 1], strides = [1, 1]} : vector<1x10xf32> to vector<1x1xf32>
    %68 = vector.extract_strided_slice %28 {offsets = [7, 0], sizes = [1, 2], strides = [1, 1]} : vector<10x2xf32> to vector<1x2xf32>
    %69 = vector.broadcast %67 : vector<1x1xf32> to vector<1x2xf32>
    %70 = arith.mulf %69, %68 : vector<1x2xf32>
    %71 = arith.addf %66, %70 : vector<1x2xf32>
    %72 = vector.extract_strided_slice %29 {offsets = [0, 8], sizes = [1, 1], strides = [1, 1]} : vector<1x10xf32> to vector<1x1xf32>
    %73 = vector.extract_strided_slice %28 {offsets = [8, 0], sizes = [1, 2], strides = [1, 1]} : vector<10x2xf32> to vector<1x2xf32>
    %74 = vector.broadcast %72 : vector<1x1xf32> to vector<1x2xf32>
    %75 = arith.mulf %74, %73 : vector<1x2xf32>
    %76 = arith.addf %71, %75 : vector<1x2xf32>
    %77 = vector.extract_strided_slice %29 {offsets = [0, 9], sizes = [1, 1], strides = [1, 1]} : vector<1x10xf32> to vector<1x1xf32>
    %78 = vector.extract_strided_slice %28 {offsets = [9, 0], sizes = [1, 2], strides = [1, 1]} : vector<10x2xf32> to vector<1x2xf32>
    %79 = vector.broadcast %77 : vector<1x1xf32> to vector<1x2xf32>
    %80 = arith.mulf %79, %78 : vector<1x2xf32>
    %81 = arith.addf %76, %80 : vector<1x2xf32>
    %cst_11 = arith.constant 5.000000e-01 : f32
    %82 = vector.broadcast %cst_11 : f32 to vector<1x2xf32>
    %83 = arith.mulf %82, %81 : vector<1x2xf32>
    %84 = math.tanh %83 : vector<1x2xf32>
    %cst_12 = arith.constant 5.000000e-01 : f32
    %85 = vector.broadcast %cst_12 : f32 to vector<1x2xf32>
    %86 = arith.mulf %85, %84 : vector<1x2xf32>
    %cst_13 = arith.constant 5.000000e-01 : f32
    %87 = vector.broadcast %cst_13 : f32 to vector<1x2xf32>
    %88 = arith.addf %86, %87 : vector<1x2xf32>
    %c0_14 = arith.constant 0 : index
    %c0_15 = arith.constant 0 : index
    %89 = vector.load %arg6[%c0_14, %c0_15] : memref<1x2xf32, #tpu.memory_space<vmem>>, vector<1x2xf32>
    tpu.vector_store %arg6[%c0_14, %c0_15], %88 {strides = array<i32>} : memref<1x2xf32, #tpu.memory_space<vmem>>, vector<1x2xf32>,
    return
  }
  func.func @transform_0(%arg0: i32) -> (i32, i32) {
    %c0_i32 = arith.constant 0 : i32
    %c0_i32_0 = arith.constant 0 : i32
    return %c0_i32, %arg0 : i32, i32
  }
  func.func @transform_1(%arg0: i32) -> (i32, i32) {
    %c0_i32 = arith.constant 0 : i32
    %c0_i32_0 = arith.constant 0 : i32
    %c0_i32_1 = arith.constant 0 : i32
    return %c0_i32, %c0_i32_0 : i32, i32
  }
  func.func @transform_2(%arg0: i32) -> (i32, i32) {
    %c0_i32 = arith.constant 0 : i32
    %c0_i32_0 = arith.constant 0 : i32
    %c0_i32_1 = arith.constant 0 : i32
    return %c0_i32, %c0_i32_0 : i32, i32
  }
  func.func @transform_3(%arg0: i32) -> (i32, i32) {
    %c0_i32 = arith.constant 0 : i32
    %c0_i32_0 = arith.constant 0 : i32
    %c0_i32_1 = arith.constant 0 : i32
    return %c0_i32, %c0_i32_0 : i32, i32
  }
  func.func @transform_4(%arg0: i32) -> (i32, i32) {
    %c0_i32 = arith.constant 0 : i32
    %c0_i32_0 = arith.constant 0 : i32
    %c0_i32_1 = arith.constant 0 : i32
    return %c0_i32, %c0_i32_0 : i32, i32
  }
  func.func @transform_5(%arg0: i32) -> (i32, i32) {
    %c0_i32 = arith.constant 0 : i32
    %c0_i32_0 = arith.constant 0 : i32
    return %c0_i32, %arg0 : i32, i32
  }
}

</mosaic_0001>

<llo_original>
// kernel: asset_allocation_forward.1
$region0: #{asset_allocation_forward.1}
  #allocation0 [shape = 'u32[]', space=smem, size = 0x4, offset = 0x4, fixed_abs, tag = 'smem constant byte address 0x4 - core index']
  #allocation1 [shape = 'u32[144,128]{1,0:T(1,128)}', space=vmem, size = 0x12000, scoped, tag = 'internal scratch']
  #allocation2 [shape = 'f32[1,1]{1,0:T(1,128)S(1)}', space=vmem, size = 0x200, scoped, tag = 'scoped memory for asset_allocation_forward.1']
  %s0 = inlined_call_operand.vmem [shape: f32[3,2], index: 0, kind: input, shape index: {}]
  %s1 = inlined_call_operand.vmem [shape: f32[10,3], index: 1, kind: input, shape index: {}]
  %s2 = inlined_call_operand.vmem [shape: f32[10,1], index: 2, kind: input, shape index: {}]
  %s3 = inlined_call_operand.vmem [shape: f32[1,10], index: 3, kind: input, shape index: {}]
  %s4 = inlined_call_operand.<no memory space> [shape: f32[1,1], index: 4, kind: input, shape index: {}]
  %s5 = inlined_call_operand.vmem [shape: f32[1,2], index: 5, kind: output, shape index: {}]
  %s6 = sld [smem:[#allocation0]]
  $region30: #{asset_allocation_forward.1} parent=0
    _
  %s8 = ssub.s32 1, %s6
  %s9 = scalar_select 0, %s8, %s6
  %v10 = vstv %s4
  %11 = vst [vmem:[#allocation2] sm:$0x1] %v10
  // Predicated region
  $region2: #{asset_allocation_forward.1} parent=0 // pred_check
    _
  $region3: #{asset_allocation_forward.1} parent=0 // pred_check_branch
    %13 = sbr.rel (0) target = $region5
  $region4: #{asset_allocation_forward.1} parent=0 // pred_region
    _
  $region5: #{asset_allocation_forward.1} parent=0 // pred_fallthru
    _
  // Predicated region
  $region6: #{asset_allocation_forward.1} parent=0 // pred_check
    _
  $region7: #{asset_allocation_forward.1} parent=0 // pred_check_branch
    %15 = sbr.rel (0) target = $region9
  $region8: #{asset_allocation_forward.1} parent=0 // pred_region
    _
  $region9: #{asset_allocation_forward.1} parent=0 // pred_fallthru
    _
  // Predicated region
  $region10: #{asset_allocation_forward.1} parent=0 // pred_check
    _
  $region11: #{asset_allocation_forward.1} parent=0 // pred_check_branch
    %17 = sbr.rel (0) target = $region13
  $region12: #{asset_allocation_forward.1} parent=0 // pred_region
    _
  $region13: #{asset_allocation_forward.1} parent=0 // pred_fallthru
    _
  // Predicated region
  $region14: #{asset_allocation_forward.1} parent=0 // pred_check
    _
  $region15: #{asset_allocation_forward.1} parent=0 // pred_check_branch
    %19 = sbr.rel (0) target = $region17
  $region16: #{asset_allocation_forward.1} parent=0 // pred_region
    _
  $region17: #{asset_allocation_forward.1} parent=0 // pred_fallthru
    _
  // Predicated region
  $region18: #{asset_allocation_forward.1} parent=0 // pred_check
    _
  $region19: #{asset_allocation_forward.1} parent=0 // pred_check_branch
    %21 = sbr.rel (0) target = $region21
  $region20: #{asset_allocation_forward.1} parent=0 // pred_region
    _
  $region21: #{asset_allocation_forward.1} parent=0 // pred_fallthru
    _
  %v22 = vld [vmem:[%s0] sm:$0x7]
  %v23 = vld [vmem:[%s1] sm:$0xff]
  %v24 = vld [vmem:[%s1 + $0x8] sm:$0x3]
  %v25 = vld [vmem:[%s2] sm:$0xff]
  %v26 = vld [vmem:[%s2 + $0x8] sm:$0x3]
  %28 = vset.pattern.permute.xlu0 0
  %29 = vperm.xlu0 %28, %v23
  %v30 = vpop.permute.xlu0 %29
  %33 = vset.pattern.permute.xlu0 0
  %34 = vperm.xlu0 %33, %v24
  %v35 = vpop.permute.xlu0 %34
  %v37 = vlaneseq
  %v38 = vshrl.u32 %v37, 7
  %v39 = vsub.s32 0, %v38
  %v40 = vrot.slane %v22, %v39
  %v41 = vmul.f32 %v30, %v40
  %v42 = vmul.f32 %v35, %v40
  %44 = vset.pattern.permute.xlu0 0
  %45 = vperm.xlu0 %44, %v25
  %v46 = vpop.permute.xlu0 %45
  %49 = vset.pattern.permute.xlu0 0
  %50 = vperm.xlu0 %49, %v26
  %v51 = vpop.permute.xlu0 %50
  %v53 = vadd.f32 %v46, %v41
  %v54 = vadd.f32 %v51, %v42
  %55 = vset.pattern.permute.xlu0 1
  %56 = vperm.xlu0 %55, %v23
  %v57 = vpop.permute.xlu0 %56
  %59 = vset.pattern.permute.xlu0 1
  %60 = vperm.xlu0 %59, %v24
  %v61 = vpop.permute.xlu0 %60
  %v63 = vlaneseq
  %v64 = vshrl.u32 %v63, 7
  %v65 = vsub.s32 1, %v64
  %v66 = vrot.slane %v22, %v65
  %v67 = vmul.f32 %v57, %v66
  %v68 = vmul.f32 %v61, %v66
  %v69 = vadd.f32 %v53, %v67
  %v70 = vadd.f32 %v54, %v68
  %71 = vset.pattern.permute.xlu0 2
  %72 = vperm.xlu0 %71, %v23
  %v73 = vpop.permute.xlu0 %72
  %75 = vset.pattern.permute.xlu0 2
  %76 = vperm.xlu0 %75, %v24
  %v77 = vpop.permute.xlu0 %76
  %v79 = vlaneseq
  %v80 = vshrl.u32 %v79, 7
  %v81 = vsub.s32 2, %v80
  %v82 = vrot.slane %v22, %v81
  %v83 = vmul.f32 %v73, %v82
  %v84 = vmul.f32 %v77, %v82
  %v85 = vadd.f32 %v69, %v83
  %v86 = vadd.f32 %v70, %v84
  %v87 = vmul.f32 %v85, 0.5
  %v88 = vmul.f32 %v86, 0.5
  %v89 = vtanh.pop %v87
  %v90 = vtanh.pop %v88
  %v91 = vmul.f32 %v89, 0.5
  %v92 = vmul.f32 %v90, 0.5
  %v93 = vadd.f32 %v91, 0.5
  %v94 = vadd.f32 %v92, 0.5
  %v95 = vld [vmem:[%s3] sm:$0x1]
  %v96 = vld [vmem:[#allocation2] sm:$0x1]
  %98 = vset.pattern.permute.xlu0 0
  %99 = vperm.xlu0 %98, %v95
  %v100 = vpop.permute.xlu0 %99
  %v102 = vlaneseq
  %v103 = vshrl.u32 %v102, 7
  %v104 = vsub.s32 0, %v103
  %v105 = vrot.slane %v100, %v104
  %v106 = vmul.f32 %v105, %v93
  %108 = vset.pattern.permute.xlu0 0
  %109 = vperm.xlu0 %108, %v96
  %v110 = vpop.permute.xlu0 %109
  %v112 = vlaneseq
  %v113 = vshrl.u32 %v112, 7
  %v114 = vsub.s32 0, %v113
  %v115 = vrot.slane %v110, %v114
  %v116 = vadd.f32 %v115, %v106
  %117 = vset.pattern.permute.xlu0 1
  %118 = vperm.xlu0 %117, %v95
  %v119 = vpop.permute.xlu0 %118
  %v121 = vlaneseq
  %v122 = vshrl.u32 %v121, 7
  %v123 = vsub.s32 0, %v122
  %v124 = vrot.slane %v119, %v123
  %v125 = vmul.f32 %v124, %v93
  %v127 = vrot.slane %v125, 1
  %v129 = vadd.f32 %v116, %v127
  %130 = vset.pattern.permute.xlu0 2
  %131 = vperm.xlu0 %130, %v95
  %v132 = vpop.permute.xlu0 %131
  %v134 = vlaneseq
  %v135 = vshrl.u32 %v134, 7
  %v136 = vsub.s32 0, %v135
  %v137 = vrot.slane %v132, %v136
  %v138 = vmul.f32 %v137, %v93
  %v140 = vrot.slane %v138, 2
  %v142 = vadd.f32 %v129, %v140
  %143 = vset.pattern.permute.xlu0 3
  %144 = vperm.xlu0 %143, %v95
  %v145 = vpop.permute.xlu0 %144
  %v147 = vlaneseq
  %v148 = vshrl.u32 %v147, 7
  %v149 = vsub.s32 0, %v148
  %v150 = vrot.slane %v145, %v149
  %v151 = vmul.f32 %v150, %v93
  %v153 = vrot.slane %v151, 3
  %v155 = vadd.f32 %v142, %v153
  %156 = vset.pattern.permute.xlu0 4
  %157 = vperm.xlu0 %156, %v95
  %v158 = vpop.permute.xlu0 %157
  %v160 = vlaneseq
  %v161 = vshrl.u32 %v160, 7
  %v162 = vsub.s32 0, %v161
  %v163 = vrot.slane %v158, %v162
  %v164 = vmul.f32 %v163, %v93
  %v166 = vrot.slane %v164, 4
  %v168 = vadd.f32 %v155, %v166
  %169 = vset.pattern.permute.xlu0 5
  %170 = vperm.xlu0 %169, %v95
  %v171 = vpop.permute.xlu0 %170
  %v173 = vlaneseq
  %v174 = vshrl.u32 %v173, 7
  %v175 = vsub.s32 0, %v174
  %v176 = vrot.slane %v171, %v175
  %v177 = vmul.f32 %v176, %v93
  %v179 = vrot.slane %v177, 5
  %v181 = vadd.f32 %v168, %v179
  %182 = vset.pattern.permute.xlu0 6
  %183 = vperm.xlu0 %182, %v95
  %v184 = vpop.permute.xlu0 %183
  %v186 = vlaneseq
  %v187 = vshrl.u32 %v186, 7
  %v188 = vsub.s32 0, %v187
  %v189 = vrot.slane %v184, %v188
  %v190 = vmul.f32 %v189, %v93
  %v192 = vrot.slane %v190, 6
  %v194 = vadd.f32 %v181, %v192
  %195 = vset.pattern.permute.xlu0 7
  %196 = vperm.xlu0 %195, %v95
  %v197 = vpop.permute.xlu0 %196
  %v199 = vlaneseq
  %v200 = vshrl.u32 %v199, 7
  %v201 = vsub.s32 0, %v200
  %v202 = vrot.slane %v197, %v201
  %v203 = vmul.f32 %v202, %v93
  %v205 = vrot.slane %v203, 7
  %v207 = vadd.f32 %v194, %v205
  %208 = vset.pattern.permute.xlu0 8
  %209 = vperm.xlu0 %208, %v95
  %v210 = vpop.permute.xlu0 %209
  %v212 = vlaneseq
  %v213 = vshrl.u32 %v212, 7
  %v214 = vsub.s32 0, %v213
  %v215 = vrot.slane %v210, %v214
  %v216 = vmul.f32 %v215, %v94
  %v217 = vadd.f32 %v207, %v216
  %218 = vset.pattern.permute.xlu0 9
  %219 = vperm.xlu0 %218, %v95
  %v220 = vpop.permute.xlu0 %219
  %v222 = vlaneseq
  %v223 = vshrl.u32 %v222, 7
  %v224 = vsub.s32 0, %v223
  %v225 = vrot.slane %v220, %v224
  %v226 = vmul.f32 %v225, %v94
  %v228 = vrot.slane %v226, 1
  %v230 = vadd.f32 %v217, %v228
  %v231 = vmul.f32 %v230, 0.5
  %v232 = vtanh.pop %v231
  %v233 = vmul.f32 %v232, 0.5
  %v234 = vadd.f32 %v233, 0.5
  %vm235 = vcmask 8192
  %236 = vst.msk [vmem:[%s5] sm:$0x1] %vm235, %v234
  // Predicated region
  $region22: #{asset_allocation_forward.1} parent=0 // pred_check
    _
  $region23: #{asset_allocation_forward.1} parent=0 // pred_check_branch
    %238 = sbr.rel (0) target = $region25
  $region24: #{asset_allocation_forward.1} parent=0 // pred_region
    _
  $region25: #{asset_allocation_forward.1} parent=0 // pred_fallthru
    _
  // Predicated region
  $region26: #{asset_allocation_forward.1} parent=0 // pred_check
    _
  $region27: #{asset_allocation_forward.1} parent=0 // pred_check_branch
    %240 = sbr.rel (0) target = $region29
  $region28: #{asset_allocation_forward.1} parent=0 // pred_region
    _
  $region29: #{asset_allocation_forward.1} parent=0 // pred_fallthru
    _

</llo_original>
